<compile_context>
chip_gen: v5e
topology: v5e:2x2
jax: 0.10.0
libtpu: 0.0.40
codegen_flags: <defaults>
</compile_context>

<pallas_src>
import functools

import numpy as np

import jax
import jax.numpy as jnp
from jax import lax
from jax.experimental import pallas as pl
from jax.experimental.pallas import tpu as pltpu


# ---------------------------------------------------------------------------
# Trace-time construction of the 1-D interpolation matrices (pure numpy).
# ---------------------------------------------------------------------------
def _source_index(in_size, out_size):
    """PyTorch F.interpolate(mode='bilinear', align_corners=False) indexing."""
    scale = in_size / out_size
    src = (np.arange(out_size, dtype=np.float64) + 0.5) * scale - 0.5
    src = np.maximum(src, 0.0)
    i0 = np.clip(np.floor(src).astype(np.int64), 0, in_size - 1)
    i1 = np.minimum(i0 + 1, in_size - 1)
    lam = (src - i0).astype(np.float32)
    return i0, i1, lam


def _interp_matrix(in_size, out_size):
    """Dense (out_size, in_size) 1-D linear-interpolation matrix (numpy)."""
    i0, i1, lam = _source_index(in_size, out_size)
    rows = np.arange(out_size)
    m = np.zeros((out_size, in_size), np.float32)
    np.add.at(m, (rows, i0), 1.0 - lam)
    np.add.at(m, (rows, i1), lam)
    return m


# ---------------------------------------------------------------------------
# Pallas kernel
# ---------------------------------------------------------------------------
def _bilinear_kernel(x_ref, ww_ref, wh_ref, out_ref):
    mb, h_in, w_in = x_ref.shape
    h_out, w_out = out_ref.shape[1], out_ref.shape[2]

    x = x_ref[...].astype(jnp.bfloat16)      # (MB, Hin, Win)
    ww = ww_ref[...]                         # (Win, Wout)  bf16
    wh = wh_ref[...]                         # (Hout, Hin)  bf16

    # W-axis interpolation: one flat single-pass bf16 MXU matmul, f32 accum.
    t = jnp.dot(x.reshape(mb * h_in, w_in), ww,
                preferred_element_type=jnp.float32)        # (MB*Hin, Wout)
    t = t.reshape(mb, h_in, w_out).astype(jnp.bfloat16)

    # H-axis interpolation: batched matmul.  Wh is broadcast once per grid
    # step (bf16, outside any loop) — footprint is charged to the MB budget.
    wh_b = jnp.broadcast_to(wh[None, :, :], (mb, h_out, h_in))
    out = lax.dot_general(
        wh_b, t,
        dimension_numbers=(((2,), (1,)), ((0,), (0,))),
        preferred_element_type=jnp.float32)                # (MB, Hout, Wout)

    out_ref[...] = out.astype(out_ref.dtype)


# ---------------------------------------------------------------------------
# Wrapper
# ---------------------------------------------------------------------------
_VMEM_LIMIT_BYTES = 48 * 1024 * 1024     # above scoped defaults, < v7x 64 MiB
_BLOCK_BUDGET_BYTES = 24 * 1024 * 1024   # blocks + in-kernel temporaries


def _pick_planes_per_step(nc, h_in, w_in, h_out, w_out, itemsize):
    """Largest MB whose double-buffered blocks + temporaries fit the budget."""
    per_plane = (
        2 * itemsize * (h_in * w_in + h_out * w_out)  # 2x-buffered in/out blocks
        + 2 * h_in * w_in                             # bf16 copy of x
        + 2 * h_out * h_in                            # bf16 Wh broadcast
        + (4 + 2) * h_in * w_out                      # f32 + bf16 intermediate
        + 4 * h_out * w_out                           # f32 result before cast
    )
    mb = max(1, _BLOCK_BUDGET_BYTES // per_plane)
    mb = min(mb, nc)
    # Keep a few grid steps alive for DMA pipelining / dual-TC (v7x) sharding.
    min_steps = 4
    if nc > 1 and pl.cdiv(nc, mb) < min_steps:
        mb = max(1, pl.cdiv(nc, min_steps))
    return mb


@functools.partial(jax.jit, static_argnames=("tar_size", "planes_per_step"))
def size_interp_forward(x, tar_size, planes_per_step=None):
    """x: (N, C, Hin, Win) -> (N, C, Hout, Wout), bilinear, align_corners=False.

    tar_size must be a static Python tuple (JAX output shapes are static).
    """
    n, c, h_in, w_in = x.shape
    h_out, w_out = tar_size
    nc = n * c

    if planes_per_step is None:
        mb = _pick_planes_per_step(nc, h_in, w_in, h_out, w_out,
                                   jnp.dtype(x.dtype).itemsize)
    else:
        mb = planes_per_step
    mb = max(1, min(mb, nc))

    # Free reshape: channel planes become the single grid/batch axis.  Stays in
    # the model dtype — no wrapper-side upcast pass.
    planes = x.reshape(nc, h_in, w_in)

    ww = jnp.asarray(_interp_matrix(w_in, w_out).T, jnp.bfloat16)   # (Win, Wout)
    wh = jnp.asarray(_interp_matrix(h_in, h_out), jnp.bfloat16)     # (Hout, Hin)

    out = pl.pallas_call(
        _bilinear_kernel,
        out_shape=jax.ShapeDtypeStruct((nc, h_out, w_out), x.dtype),
        grid_spec=pltpu.PrefetchScalarGridSpec(
            num_scalar_prefetch=0,
            grid=(pl.cdiv(nc, mb),),          # ragged last block handled by Pallas
            in_specs=[
                pl.BlockSpec((mb, h_in, w_in), lambda i: (i, 0, 0)),
                pl.BlockSpec((w_in, w_out), lambda i: (0, 0)),
                pl.BlockSpec((h_out, h_in), lambda i: (0, 0)),
            ],
            out_specs=pl.BlockSpec((mb, h_out, w_out), lambda i: (i, 0, 0)),
        ),
        compiler_params=pltpu.CompilerParams(
            dimension_semantics=("parallel",),
            vmem_limit_bytes=_VMEM_LIMIT_BYTES),
    )(planes, ww, wh)

    return out.reshape(n, c, h_out, w_out)


# ---------------------------------------------------------------------------
# Pure-JAX reference (gather + lerp), mirrors PyTorch bilinear interpolate.
# ---------------------------------------------------------------------------
def size_interp_reference(x, tar_size):
    h_in, w_in = x.shape[2], x.shape[3]
    h_out, w_out = tar_size
    hi0, hi1, hl = _source_index(h_in, h_out)
    wi0, wi1, wl = _source_index(w_in, w_out)
    xf = x.astype(jnp.float32)
    top = xf[:, :, hi0, :]
    bot = xf[:, :, hi1, :]
    rows = top + hl[None, None, :, None] * (bot - top)      # (N, C, Hout, Win)
    left = rows[:, :, :, wi0]
    right = rows[:, :, :, wi1]
    out = left + wl[None, None, None, :] * (right - left)   # (N, C, Hout, Wout)
    return out.astype(x.dtype)


if __name__ == "__main__":
    key = jax.random.PRNGKey(0)
    x = jax.random.normal(key, (2, 4, 16, 16), jnp.float32)

    # Upsample 16x16 -> 32x32 with the auto-sized plane block.
    out = jax.block_until_ready(size_interp_forward(x, tar_size=(32, 32)))
    ref = jax.block_until_ready(size_interp_reference(x, (32, 32)))
    assert out.shape == (2, 4, 32, 32), out.shape
    # Tolerance covers the single-pass bf16 MXU path (rel err ~1e-3..1e-2);
    # any indexing/layout bug produces O(1) errors and still fails.
    assert jnp.allclose(out, ref, atol=2e-2, rtol=2e-2), float(
        jnp.max(jnp.abs(out - ref)))

    # Non-square downsampling target with a ragged last grid block
    # (NC=8, MB=3 -> 3 grid steps, 2-plane tail; no wrapper-side padding).
    out2 = jax.block_until_ready(
        size_interp_forward(x, tar_size=(12, 20), planes_per_step=3))
    ref2 = jax.block_until_ready(size_interp_reference(x, (12, 20)))
    assert out2.shape == (2, 4, 12, 20), out2.shape
    assert jnp.allclose(out2, ref2, atol=2e-2, rtol=2e-2), float(
        jnp.max(jnp.abs(out2 - ref2)))

    print("KERNEL_OK")
</pallas_src>

<mosaic_0001>
module attributes {stable_mosaic.version = 11 : i64} {
  func.func @_bilinear_kernel(%arg0: i32, %arg1: memref<2x16x16xf32, #tpu.memory_space<vmem>>, %arg2: memref<16x32xbf16, #tpu.memory_space<vmem>>, %arg3: memref<32x16xbf16, #tpu.memory_space<vmem>>, %arg4: memref<2x32x32xf32, #tpu.memory_space<vmem>>) attributes {dimension_semantics = [#tpu.dimension_semantics<parallel>], iteration_bounds = array<i64: 4>, scalar_prefetch = 0 : i64, scratch_operands = 0 : i64, tpu.core_type = #tpu.core_type<tc>, window_params = [{transform_indices = @transform_0, window_bounds = array<i64: 2, 16, 16>}, {pipeline_mode = #tpu.pipeline_mode<synchronous>, transform_indices = @transform_1, window_bounds = array<i64: 16, 32>}, {pipeline_mode = #tpu.pipeline_mode<synchronous>, transform_indices = @transform_2, window_bounds = array<i64: 32, 16>}, {transform_indices = @transform_3, window_bounds = array<i64: 2, 32, 32>}]} {
    %c0 = arith.constant 0 : index
    %c0_0 = arith.constant 0 : index
    %c0_1 = arith.constant 0 : index
    %0 = vector.load %arg1[%c0, %c0_0, %c0_1] : memref<2x16x16xf32, #tpu.memory_space<vmem>>, vector<2x16x16xf32>
    %1 = arith.truncf %0 : vector<2x16x16xf32> to vector<2x16x16xbf16>
    %c0_2 = arith.constant 0 : index
    %c0_3 = arith.constant 0 : index
    %2 = vector.load %arg2[%c0_2, %c0_3] : memref<16x32xbf16, #tpu.memory_space<vmem>>, vector<16x32xbf16>
    %c0_4 = arith.constant 0 : index
    %c0_5 = arith.constant 0 : index
    %3 = vector.load %arg3[%c0_4, %c0_5] : memref<32x16xbf16, #tpu.memory_space<vmem>>, vector<32x16xbf16>
    %4 = vector.shape_cast %1 : vector<2x16x16xbf16> to vector<32x16xbf16>
    %cst = arith.constant dense<0.000000e+00> : vector<32x32xf32>
    %5 = tpu.matmul %4, %2, %cst {dimension_numbers = #tpu.dot_dimension_numbers<[1], [0], [0], [1], [0, 0, 1, 1], [], []>} : vector<32x16xbf16>, vector<16x32xbf16>, vector<32x32xf32> -> vector<32x32xf32>
    %6 = vector.shape_cast %5 : vector<32x32xf32> to vector<2x16x32xf32>
    %7 = arith.truncf %6 : vector<2x16x32xf32> to vector<2x16x32xbf16>
    %8 = vector.shape_cast %3 : vector<32x16xbf16> to vector<1x32x16xbf16>
    %9 = vector.shape_cast %8 : vector<1x32x16xbf16> to vector<1x32x16xbf16>
    %10 = vector.broadcast %9 : vector<1x32x16xbf16> to vector<2x32x16xbf16>
    %cst_6 = arith.constant dense<0.000000e+00> : vector<2x32x32xf32>
    %11 = tpu.matmul %10, %7, %cst_6 {dimension_numbers = #tpu.dot_dimension_numbers<[2], [1], [1], [2], [0, 0, 0, 1, 1, 2], [0], [0]>} : vector<2x32x16xbf16>, vector<2x16x32xbf16>, vector<2x32x32xf32> -> vector<2x32x32xf32>
    %c0_7 = arith.constant 0 : index
    %c0_8 = arith.constant 0 : index
    %c0_9 = arith.constant 0 : index
    %12 = vector.load %arg4[%c0_7, %c0_8, %c0_9] : memref<2x32x32xf32, #tpu.memory_space<vmem>>, vector<2x32x32xf32>
    tpu.vector_store %arg4[%c0_7, %c0_8, %c0_9], %11 {strides = array<i32>} : memref<2x32x32xf32, #tpu.memory_space<vmem>>, vector<2x32x32xf32>,
    return
  }
  func.func @transform_0(%arg0: i32) -> (i32, i32, i32) {
    %c0_i32 = arith.constant 0 : i32
    %c0_i32_0 = arith.constant 0 : i32
    %c0_i32_1 = arith.constant 0 : i32
    return %arg0, %c0_i32, %c0_i32_0 : i32, i32, i32
  }
  func.func @transform_1(%arg0: i32) -> (i32, i32) {
    %c0_i32 = arith.constant 0 : i32
    %c0_i32_0 = arith.constant 0 : i32
    %c0_i32_1 = arith.constant 0 : i32
    return %c0_i32, %c0_i32_0 : i32, i32
  }
  func.func @transform_2(%arg0: i32) -> (i32, i32) {
    %c0_i32 = arith.constant 0 : i32
    %c0_i32_0 = arith.constant 0 : i32
    %c0_i32_1 = arith.constant 0 : i32
    return %c0_i32, %c0_i32_0 : i32, i32
  }
  func.func @transform_3(%arg0: i32) -> (i32, i32, i32) {
    %c0_i32 = arith.constant 0 : i32
    %c0_i32_0 = arith.constant 0 : i32
    %c0_i32_1 = arith.constant 0 : i32
    return %arg0, %c0_i32, %c0_i32_0 : i32, i32, i32
  }
}

</mosaic_0001>

<llo_original>
// kernel: size_interp_forward.1
$region0: #{size_interp_forward.1}
  #allocation0 [shape = 'u32[]', space=smem, size = 0x4, offset = 0x4, fixed_abs, tag = 'smem constant byte address 0x4 - core index']
  #allocation1 [shape = 'u32[72,128]{1,0:T(1,128)}', space=vmem, size = 0x9000, scoped, tag = 'internal scratch']
  %s0 = inlined_call_operand.hbm [shape: f32[8,16,16], index: 0, kind: input, shape index: {}]
  %s1 = inlined_call_operand.hbm [shape: bf16[16,32], index: 1, kind: input, shape index: {}]
  %s2 = inlined_call_operand.hbm [shape: bf16[32,16], index: 2, kind: input, shape index: {}]
  %s3 = inlined_call_operand.hbm [shape: f32[8,32,32], index: 3, kind: output, shape index: {}]
  %s4 = sld [smem:[#allocation0]]
  $region57: #{size_interp_forward.1} parent=0
    _
  %s6 = ssub.s32 1, %s4
  %s7 = scalar_select 0, %s6, %s4
  $region1: #{size_interp_forward.1} parent=0
    #allocation2 [shape = 'u8[32768]{0}', space=vmem, size = 0x8000, scoped, tag = 'input window, operand 0']
    #allocation3 [shape = 's32[2]{0}', space=sflag, size = 0x8, scoped, tag = 'scoped memory for size_interp_forward.1']
    #allocation4 [shape = 's32[2]{0}', space=sflag, size = 0x8, scoped, tag = 'scoped memory for size_interp_forward.1']
    #allocation5 [shape = 'u8[4096]{0}', space=vmem, size = 0x1000, scoped, tag = 'input window, operand 1, single buffered']
    #allocation6 [shape = 's32[1]{0}', space=sflag, size = 0x4, scoped, tag = 'scoped memory for size_interp_forward.1']
    #allocation7 [shape = 'u8[8192]{0}', space=vmem, size = 0x2000, scoped, tag = 'input window, operand 2, single buffered']
    #allocation8 [shape = 'u8[65536]{0}', space=vmem, size = 0x10000, scoped, tag = 'output window, operand 0']
    %8 = vsyncpa [#allocation3], 0
    %s9 = scalar_lea.sflag [#allocation3], 1
    %10 = vsyncpa %s9, 0
    %11 = vsyncpa [#allocation6], 0
    %12 = vsyncpa [#allocation4], 0
    %s13 = scalar_lea.sflag [#allocation4], 1
    %14 = vsyncpa %s13, 0
    loop: start=0, step=1, limit=6
    $region2: #{size_interp_forward.1} parent=1 // loop_pre_header
      _
    $region3: #{size_interp_forward.1} parent=1 // loop_header
      %s16 = sphi 0, %s20
      %p17 = scmp.ge.s32.totalorder %s16, 6
      %s26 = sphi 0, %s28
      %s29 = sphi 0, %s26
      %s30 = sphi 0, %s29
      %s46 = sphi 0, %s30
      %s50 = sphi 0, %s50
      %s52 = sphi 0, %s50
      %s53 = sphi 0, %s52
      %s67 = sphi 0, %s53
      %s71 = sphi 0, %s71
      %s73 = sphi 0, %s71
      %s74 = sphi 0, %s73
      %s88 = sphi 0, %s74
      %s94 = sphi 0, %s96
      %s97 = sphi 0, %s94
      %s98 = sphi 0, %s97
      %s114 = sphi 0, %s98
    $region4: #{size_interp_forward.1} parent=1 // loop_header_branch
      %19 = sbr.rel (%p17) target = $region8
    $region5: #{size_interp_forward.1} parent=1 // loop_body
      %s21 = ssub.s32 %s16, 1
      %s22 = ssub.s32 %s16, 2
      %s23 = sadd.s32 %s16, 1
      %s24 = ssub.s32 %s16, %s23
      %p25 = scmp.eq.s32.totalorder %s24, 0
      %s27 = sadd.s32 %s26, 1
      %s28 = scalar_select %p25, %s26, %s27
      %p31 = pneg %p25
      %p32 = scmp.eq.s32.totalorder %s16, 3
      %p33 = por %p31, %p32
      %p34 = scmp.ne.s32.totalorder %s26, %s29
      %p35 = scmp.eq.s32.totalorder %s16, 0
      %p36 = por %p34, %p35
      %p37 = scmp.ne.s32.totalorder %s26, %s29
      %p38 = scmp.eq.s32.totalorder %s21, 3
      %p39 = por %p37, %p38
      %p40 = scmp.ne.s32.totalorder %s29, %s30
      %p41 = scmp.eq.s32.totalorder %s21, 0
      %p42 = por %p40, %p41
      %p43 = scmp.ne.s32.totalorder %s29, %s30
      %p44 = scmp.eq.s32.totalorder %s22, 3
      %p45 = por %p43, %p44
      %p47 = scmp.ne.s32.totalorder %s30, %s46
      %p48 = scmp.eq.s32.totalorder %s22, 0
      %p49 = por %p47, %p48
      %s51 = sadd.s32 %s50, 1
      %p54 = scmp.eq.s32.totalorder %s16, 3
      %p55 = scmp.ne.s32.totalorder %s50, %s52
      %p56 = scmp.eq.s32.totalorder %s16, 0
      %p57 = por %p55, %p56
      %p58 = scmp.ne.s32.totalorder %s50, %s52
      %p59 = scmp.eq.s32.totalorder %s21, 3
      %p60 = por %p58, %p59
      %p61 = scmp.ne.s32.totalorder %s52, %s53
      %p62 = scmp.eq.s32.totalorder %s21, 0
      %p63 = por %p61, %p62
      %p64 = scmp.ne.s32.totalorder %s52, %s53
      %p65 = scmp.eq.s32.totalorder %s22, 3
      %p66 = por %p64, %p65
      %p68 = scmp.ne.s32.totalorder %s53, %s67
      %p69 = scmp.eq.s32.totalorder %s22, 0
      %p70 = por %p68, %p69
      %s72 = sadd.s32 %s71, 1
      %p75 = scmp.eq.s32.totalorder %s16, 3
      %p76 = scmp.ne.s32.totalorder %s71, %s73
      %p77 = scmp.eq.s32.totalorder %s16, 0
      %p78 = por %p76, %p77
      %p79 = scmp.ne.s32.totalorder %s71, %s73
      %p80 = scmp.eq.s32.totalorder %s21, 3
      %p81 = por %p79, %p80
      %p82 = scmp.ne.s32.totalorder %s73, %s74
      %p83 = scmp.eq.s32.totalorder %s21, 0
      %p84 = por %p82, %p83
      %p85 = scmp.ne.s32.totalorder %s73, %s74
      %p86 = scmp.eq.s32.totalorder %s22, 3
      %p87 = por %p85, %p86
      %p89 = scmp.ne.s32.totalorder %s74, %s88
      %p90 = scmp.eq.s32.totalorder %s22, 0
      %p91 = por %p89, %p90
      %s92 = ssub.s32 %s16, %s23
      %p93 = scmp.eq.s32.totalorder %s92, 0
      %s95 = sadd.s32 %s94, 1
      %s96 = scalar_select %p93, %s94, %s95
      %p99 = pneg %p93
      %p100 = scmp.eq.s32.totalorder %s16, 3
      %p101 = por %p99, %p100
      %p102 = scmp.ne.s32.totalorder %s94, %s97
      %p103 = scmp.eq.s32.totalorder %s16, 0
      %p104 = por %p102, %p103
      %p105 = scmp.ne.s32.totalorder %s94, %s97
      %p106 = scmp.eq.s32.totalorder %s21, 3
      %p107 = por %p105, %p106
      %p108 = scmp.ne.s32.totalorder %s97, %s98
      %p109 = scmp.eq.s32.totalorder %s21, 0
      %p110 = por %p108, %p109
      %p111 = scmp.ne.s32.totalorder %s97, %s98
      %p112 = scmp.eq.s32.totalorder %s22, 3
      %p113 = por %p111, %p112
      %p115 = scmp.ne.s32.totalorder %s98, %s114
      %p116 = scmp.eq.s32.totalorder %s22, 0
      %p117 = por %p115, %p116
      %p118 = scmp.le.s32.totalorder 1, %s16
      %p119 = scmp.lt.s32.totalorder %s16, 5
      %p120 = pnand %p118, %p119
      %p121 = pneg %p120
      // Predicated region
      $region9: #{size_interp_forward.1} parent=5 // pred_check
        _
      $region10: #{size_interp_forward.1} parent=5 // pred_check_branch
        %123 = sbr.rel (%p120) target = $region12
      $region11: #{size_interp_forward.1} parent=5 // pred_region
        %s124 = ssub.s32 %s16, 1
        // Predicated region
        $region13: #{size_interp_forward.1} parent=11 // pred_check
          %p125 = pneg %p63
        $region14: #{size_interp_forward.1} parent=11 // pred_check_branch
          %127 = sbr.rel (%p125) target = $region16
        $region15: #{size_interp_forward.1} parent=11 // pred_region
          %129 = vsyncadd [#allocation6], 0
          %s130 = sshll.u32 %s1, 4
          %s131 = int_to_ptr.hbm [resolvable:$true] %s130
          %s132 = sshll.u32 [#allocation5], 4
          %s133 = int_to_ptr.vmem [resolvable:$true] %s132
          %138 = dma.hbm_to_vmem [thread:$0]  %s131, 128, %s133, [#allocation6], 64, 64, 4
        $region16: #{size_interp_forward.1} parent=11 // pred_fallthru
          _
        // Predicated region
        $region17: #{size_interp_forward.1} parent=11 // pred_check
          %p139 = pneg %p84
        $region18: #{size_interp_forward.1} parent=11 // pred_check_branch
          %141 = sbr.rel (%p139) target = $region20
        $region19: #{size_interp_forward.1} parent=11 // pred_region
          %143 = vsyncadd [#allocation6], 0
          %s144 = sshll.u32 %s2, 4
          %s145 = int_to_ptr.hbm [resolvable:$true] %s144
          %s146 = sshll.u32 [#allocation7], 4
          %s147 = int_to_ptr.vmem [resolvable:$true] %s146
          %152 = dma.hbm_to_vmem [thread:$0]  %s145, 256, %s147, [#allocation6], 64, 64, 4
        $region20: #{size_interp_forward.1} parent=11 // pred_fallthru
          _
      $region12: #{size_interp_forward.1} parent=5 // pred_fallthru
        _
      %p153 = scmp.lt.s32.totalorder %s16, 4
      // Predicated region
      $region21: #{size_interp_forward.1} parent=5 // pred_check
        %p154 = pneg %p153
      $region22: #{size_interp_forward.1} parent=5 // pred_check_branch
        %156 = sbr.rel (%p154) target = $region24
      $region23: #{size_interp_forward.1} parent=5 // pred_region
        // Predicated region
        $region25: #{size_interp_forward.1} parent=23 // pred_check
          %p157 = pneg %p36
        $region26: #{size_interp_forward.1} parent=23 // pred_check_branch
          %159 = sbr.rel (%p157) target = $region28
        $region27: #{size_interp_forward.1} parent=23 // pred_region
          %s160 = sand.u32 %s26, 1
          %s161 = scalar_lea.sflag [#allocation3], %s160
          %s162 = sand.u32 %s26, 1
          %s163 = smul.addr %s162, 32
          %s164 = scalar_lea.vmem [#allocation2], %s163
          %s165 = smul.u32 2, %s16
          %167 = vsyncadd %s161, 0
          %s168 = smul.addr %s165, 2
          %s169 = smul.addr %s168, 8
          %s170 = scalar_lea.hbm %s0, %s169
          %s171 = sshll.u32 %s170, 4
          %s172 = int_to_ptr.hbm [resolvable:$true] %s171
          %s173 = sshll.u32 %s164, 4
          %s174 = int_to_ptr.vmem [resolvable:$true] %s173
          %179 = dma.hbm_to_vmem [thread:$0]  %s172, 512, %s174, %s161, 128, 128, 8
        $region28: #{size_interp_forward.1} parent=23 // pred_fallthru
          _
      $region24: #{size_interp_forward.1} parent=5 // pred_fallthru
        _
      %p180 = scmp.le.s32.totalorder 1, %s16
      %p181 = scmp.lt.s32.totalorder %s16, 5
      %p182 = pnand %p180, %p181
      %p183 = pneg %p182
      // Predicated region
      $region29: #{size_interp_forward.1} parent=5 // pred_check
        _
      $region30: #{size_interp_forward.1} parent=5 // pred_check_branch
        %185 = sbr.rel (%p182) target = $region32
      $region31: #{size_interp_forward.1} parent=5 // pred_region
        %s186 = ssub.s32 %s16, 1
        %s187 = sand.u32 %s29, 1
        %s188 = scalar_lea.sflag [#allocation3], %s187
        %s189 = sand.u32 %s29, 1
        %s190 = smul.addr %s189, 32
        %s191 = scalar_lea.vmem [#allocation2], %s190
        // Predicated region
        $region33: #{size_interp_forward.1} parent=31 // pred_check
          %p192 = pneg %p42
        $region34: #{size_interp_forward.1} parent=31 // pred_check_branch
          %194 = sbr.rel (%p192) target = $region36
        $region35: #{size_interp_forward.1} parent=31 // pred_region
          %196 = dma.done %s188, 512
        $region36: #{size_interp_forward.1} parent=31 // pred_fallthru
          _
        // Predicated region
        $region37: #{size_interp_forward.1} parent=31 // pred_check
          %p197 = pneg %p63
        $region38: #{size_interp_forward.1} parent=31 // pred_check_branch
          %199 = sbr.rel (%p197) target = $region40
        $region39: #{size_interp_forward.1} parent=31 // pred_region
          %201 = dma.done [#allocation6], 128
        $region40: #{size_interp_forward.1} parent=31 // pred_fallthru
          _
        // Predicated region
        $region41: #{size_interp_forward.1} parent=31 // pred_check
          %p202 = pneg %p84
        $region42: #{size_interp_forward.1} parent=31 // pred_check_branch
          %204 = sbr.rel (%p202) target = $region44
        $region43: #{size_interp_forward.1} parent=31 // pred_region
          %206 = dma.done [#allocation6], 256
        $region44: #{size_interp_forward.1} parent=31 // pred_fallthru
          _
        %s207 = sand.u32 %s29, 1
        %s208 = scalar_lea.sflag [#allocation3], %s207
        %s209 = sand.u32 %s29, 1
        %s210 = smul.addr %s209, 32
        %s211 = scalar_lea.vmem [#allocation2], %s210
        %p212 = pneg %p42
        %p213 = pneg %p39
        %p214 = pneg %p63
        %p215 = pneg %p60
        %p216 = pneg %p84
        %p217 = pneg %p81
        %p218 = pneg %p110
        %p219 = pneg %p107
        %s220 = sand.u32 %s97, 1
        %s221 = scalar_lea.sflag [#allocation4], %s220
        %s222 = sand.u32 %s97, 1
        %s223 = smul.addr %s222, 64
        %s224 = scalar_lea.vmem [#allocation8], %s223
        %s225 = smul.u32 2, %s21
        %s226 = smul.u32 2, %s21
        %v228 = vld [vmem:[%s191] sm:$0xff]
        %v229 = vld [vmem:[%s191 + $0x8] sm:$0xff]
        %v230 = vld [vmem:[%s191 + $0x10] sm:$0xff]
        %v231 = vld [vmem:[%s191 + $0x18] sm:$0xff]
        %v232 = vpack.c.bf16 %v228, %v228
        %v233 = vpack.c.bf16 %v229, %v229
        %v234 = vpack.c.bf16 %v230, %v230
        %v235 = vpack.c.bf16 %v231, %v231
        %v236 = vld [vmem:[#allocation5] sm:$0xf]
        %v237 = vld [vmem:[#allocation5 + $0x4] sm:$0xf]
        %v238 = vld [vmem:[#allocation7] sm:$0xf]
        %v239 = vld [vmem:[#allocation7 + $0x4] sm:$0xf]
        %v240 = vld [vmem:[#allocation7 + $0x8] sm:$0xf]
        %v241 = vld [vmem:[#allocation7 + $0xc] sm:$0xf]
        %v246 = vunpack.c.l.b16 %v232
        %v247 = vunpack.c.l.b16 %v233
        %v248 = vunpack.c.l.b16 %v234
        %v249 = vunpack.c.l.b16 %v235
        %v250 = vpack.c.b16 %v247, %v246
        %v251 = vpack.c.b16 %v249, %v248
        %v254 = vunpack.c.l.b16 %v236
        %v255 = vunpack.c.l.b16 %v237
        %v256 = vpack.c.b16 %v255, %v254
        %vm258 = vcmask 130048
        %v260 = vsel %vm258, %v250, 0
        %v263 = vsel %vm258, %v251, 0
        %265 = vmatpush.bf16.msra.mxu0 0
        %266 = vmatpush.bf16.msra.mxu0 0
        %267 = vmatpush.bf16.msra.mxu0 0
        %268 = vmatpush.bf16.msra.mxu0 0
        %269 = vmatpush.bf16.msra.mxu0 0
        %270 = vmatpush.bf16.msra.mxu0 0
        %271 = vmatpush.bf16.msra.mxu0 0
        %272 = vmatpush.bf16.msra.mxu0 %v256
        %273 = vmatmul.bf16.gmra.mxu0 %v260
        %v274 = vpop.f32.mrf.mxu0
        %v275 = vadd.f32 0.0, %v274
        %v276 = vpop.f32.mrf.mxu0
        %v277 = vadd.f32 0.0, %v276
        %278 = vmatmul.bf16.gmra.mxu0 %v263
        %v279 = vpop.f32.mrf.mxu0
        %v280 = vadd.f32 0.0, %v279
        %v281 = vpop.f32.mrf.mxu0
        %v282 = vadd.f32 0.0, %v281
        %283 = vdwg.mxu0
        %v284 = vpack.c.bf16 %v275, %v275
        %v285 = vpack.c.bf16 %v277, %v277
        %v286 = vpack.c.bf16 %v280, %v280
        %v287 = vpack.c.bf16 %v282, %v282
        %v292 = vunpack.c.l.b16 %v238
        %v293 = vunpack.c.l.b16 %v239
        %v294 = vunpack.c.l.b16 %v240
        %v295 = vunpack.c.l.b16 %v241
        %v296 = vpack.c.b16 %v293, %v292
        %v297 = vpack.c.b16 %v295, %v294
        %v300 = vunpack.c.l.b16 %v284
        %v301 = vunpack.c.l.b16 %v285
        %v302 = vpack.c.b16 %v301, %v300
        %v305 = vsel %vm258, %v296, 0
        %v308 = vsel %vm258, %v297, 0
        %310 = vmatpush.bf16.msra.mxu0 0
        %311 = vmatpush.bf16.msra.mxu0 0
        %312 = vmatpush.bf16.msra.mxu0 0
        %313 = vmatpush.bf16.msra.mxu0 0
        %314 = vmatpush.bf16.msra.mxu0 0
        %315 = vmatpush.bf16.msra.mxu0 0
        %316 = vmatpush.bf16.msra.mxu0 0
        %317 = vmatpush.bf16.msra.mxu0 %v302
        %318 = vmatmul.bf16.gmra.mxu0 %v305
        %v319 = vpop.f32.mrf.mxu0
        %v320 = vadd.f32 0.0, %v319
        %v321 = vpop.f32.mrf.mxu0
        %v322 = vadd.f32 0.0, %v321
        %323 = vmatmul.bf16.gmra.mxu0 %v308
        %v324 = vpop.f32.mrf.mxu0
        %v325 = vadd.f32 0.0, %v324
        %v326 = vpop.f32.mrf.mxu0
        %v327 = vadd.f32 0.0, %v326
        %328 = vdwg.mxu0
        %v331 = vunpack.c.l.b16 %v286
        %v332 = vunpack.c.l.b16 %v287
        %v333 = vpack.c.b16 %v332, %v331
        %335 = vmatpush.bf16.msra.mxu0 0
        %336 = vmatpush.bf16.msra.mxu0 0
        %337 = vmatpush.bf16.msra.mxu0 0
        %338 = vmatpush.bf16.msra.mxu0 0
        %339 = vmatpush.bf16.msra.mxu0 0
        %340 = vmatpush.bf16.msra.mxu0 0
        %341 = vmatpush.bf16.msra.mxu0 0
        %342 = vmatpush.bf16.msra.mxu0 %v333
        %343 = vmatmul.bf16.gmra.mxu0 %v305
        %v344 = vpop.f32.mrf.mxu0
        %v345 = vadd.f32 0.0, %v344
        %v346 = vpop.f32.mrf.mxu0
        %v347 = vadd.f32 0.0, %v346
        %348 = vmatmul.bf16.gmra.mxu0 %v308
        %v349 = vpop.f32.mrf.mxu0
        %v350 = vadd.f32 0.0, %v349
        %v351 = vpop.f32.mrf.mxu0
        %v352 = vadd.f32 0.0, %v351
        %353 = vdwg.mxu0
        %vm354 = vcmask 261120
        %355 = vst.msk [vmem:[%s224] sm:$0xff] %vm354, %v320
        %356 = vst.msk [vmem:[%s224 + $0x8] sm:$0xff] %vm354, %v322
        %357 = vst.msk [vmem:[%s224 + $0x10] sm:$0xff] %vm354, %v325
        %358 = vst.msk [vmem:[%s224 + $0x18] sm:$0xff] %vm354, %v327
        %359 = vst.msk [vmem:[%s224 + $0x20] sm:$0xff] %vm354, %v345
        %360 = vst.msk [vmem:[%s224 + $0x28] sm:$0xff] %vm354, %v347
        %361 = vst.msk [vmem:[%s224 + $0x30] sm:$0xff] %vm354, %v350
        %362 = vst.msk [vmem:[%s224 + $0x38] sm:$0xff] %vm354, %v352
        %s363 = sand.u32 %s97, 1
        %s364 = scalar_lea.sflag [#allocation4], %s363
        %s365 = sand.u32 %s97, 1
        %s366 = smul.addr %s365, 64
        %s367 = scalar_lea.vmem [#allocation8], %s366
        // Predicated region
        $region45: #{size_interp_forward.1} parent=31 // pred_check
          %p368 = pneg %p107
        $region46: #{size_interp_forward.1} parent=31 // pred_check_branch
          %370 = sbr.rel (%p368) target = $region48
        $region47: #{size_interp_forward.1} parent=31 // pred_region
          %s371 = smul.u32 2, %s21
          %373 = vsyncadd %s364, 0
          %s374 = smul.addr %s371, 4
          %s375 = smul.addr %s374, 8
          %s376 = scalar_lea.hbm %s3, %s375
          %s377 = sshll.u32 %s367, 4
          %s378 = int_to_ptr.vmem [resolvable:$true] %s377
          %s379 = sshll.u32 %s376, 4
          %s380 = int_to_ptr.hbm [resolvable:$true] %s379
          %385 = dma.vmem_to_hbm [thread:$0]  %s378, 1024, %s380, %s364, 128, 128, 8
        $region48: #{size_interp_forward.1} parent=31 // pred_fallthru
          _
      $region32: #{size_interp_forward.1} parent=5 // pred_fallthru
        _
      %p386 = scmp.le.s32.totalorder 2, %s16
      // Predicated region
      $region49: #{size_interp_forward.1} parent=5 // pred_check
        %p387 = pneg %p386
      $region50: #{size_interp_forward.1} parent=5 // pred_check_branch
        %389 = sbr.rel (%p387) target = $region52
      $region51: #{size_interp_forward.1} parent=5 // pred_region
        %s390 = ssub.s32 %s16, 2
        // Predicated region
        $region53: #{size_interp_forward.1} parent=51 // pred_check
          %p391 = pneg %p113
        $region54: #{size_interp_forward.1} parent=51 // pred_check_branch
          %393 = sbr.rel (%p391) target = $region56
        $region55: #{size_interp_forward.1} parent=51 // pred_region
          %s394 = sand.u32 %s98, 1
          %s395 = scalar_lea.sflag [#allocation4], %s394
          %s396 = sand.u32 %s98, 1
          %s397 = smul.addr %s396, 64
          %s398 = scalar_lea.vmem [#allocation8], %s397
          %400 = dma.done %s395, 1024
        $region56: #{size_interp_forward.1} parent=51 // pred_fallthru
          _
      $region52: #{size_interp_forward.1} parent=5 // pred_fallthru
        _
    $region6: #{size_interp_forward.1} parent=1 // loop_footer
      %s20 = sadd.s32 1, %s16
    $region7: #{size_interp_forward.1} parent=1 // loop_footer_branch
      %15 = sbr.rel target = $region3
    $region8: #{size_interp_forward.1} parent=1 // loop_exit
      _
    %401 = vsyncpa [#allocation3], 1
    %s402 = scalar_lea.sflag [#allocation3], 1
    %403 = vsyncpa %s402, 1
    %404 = vsyncpa [#allocation6], 1
    %405 = vsyncpa [#allocation4], 1
    %s406 = scalar_lea.sflag [#allocation4], 1
    %407 = vsyncpa %s406, 1

</llo_original>
